<compile_context>
chip_gen: v7x
topology: tpu7x:2x2x1
jax: 0.10.0
libtpu: 0.0.40
codegen_flags: <defaults>
</compile_context>

<pallas_src>
import functools
import math

import jax
import jax.numpy as jnp
from jax.experimental import pallas as pl
from jax.experimental.pallas import tpu as pltpu

_TARGET_BLOCK_BYTES = 2 * 1024 * 1024     # ~2 MiB blocks (f32-equivalent accounting)
_VMEM_LIMIT_BYTES = 32 * 1024 * 1024      # in+out double-buffered + f32 temps << 32 MiB


def _round_down(x, m):
    return (x // m) * m


def _pick_sublane_tile(rows, row_bytes, min_grid=4):
    """Rows per block: ~target bytes, multiple of 8, keep >= min_grid grid steps."""
    if rows <= 8:
        return rows
    tile = max(8, _round_down(_TARGET_BLOCK_BYTES // max(row_bytes, 1), 8))
    cap = max(8, _round_down(-(-rows // min_grid), 8))
    return min(tile, cap)


def _pick_lane_tile(cols, col_bytes, min_grid=2):
    """Lanes per block: ~target bytes, multiple of 128, keep >= min_grid grid steps."""
    if cols <= 128:
        return cols
    tile = max(128, _round_down(_TARGET_BLOCK_BYTES // max(col_bytes, 1), 128))
    cap = max(128, _round_down(-(-cols // min_grid), 128))
    return min(tile, cap)


# ----------------------------------------------------------------------------
# Kernels
# ----------------------------------------------------------------------------
def _ln_last_kernel(x_ref, w_ref, b_ref, o_ref, *, eps):
    """Normalize over the last (lane) axis. x_ref: (T, C), w/b: (1, C)."""
    x = x_ref[...].astype(jnp.float32)
    mean = jnp.mean(x, axis=-1, keepdims=True)
    xc = x - mean
    var = jnp.mean(xc * xc, axis=-1, keepdims=True)     # biased variance (matches torch)
    inv = jax.lax.rsqrt(var + eps)
    w = w_ref[...].astype(jnp.float32)
    b = b_ref[...].astype(jnp.float32)
    o_ref[...] = (xc * inv * w + b).astype(o_ref.dtype)


def _ln_packed_kernel(x_ref, w_ref, b_ref, sel_ref, selt_ref, o_ref, *, eps, inv_c):
    """Lane-dense path: G groups of C channels packed along the lane axis.

    x_ref: (T, G*C).  sel: (G*C, G) block-diagonal ones; selt: (G, G*C).
    Group sums and the broadcast back are small MXU matmuls, so the block stays
    lane-dense (no masked vst, no in-kernel reshape/relayout).
    """
    x = x_ref[...].astype(jnp.float32)
    sel = sel_ref[...]
    selt = selt_ref[...]
    mean_g = jnp.dot(x, sel, preferred_element_type=jnp.float32) * inv_c        # (T, G)
    mean = jnp.dot(mean_g, selt, preferred_element_type=jnp.float32)            # (T, G*C)
    xc = x - mean
    var_g = jnp.dot(xc * xc, sel, preferred_element_type=jnp.float32) * inv_c   # (T, G)
    inv_g = jax.lax.rsqrt(var_g + eps)
    inv = jnp.dot(inv_g, selt, preferred_element_type=jnp.float32)              # (T, G*C)
    w = w_ref[...].astype(jnp.float32)
    b = b_ref[...].astype(jnp.float32)
    o_ref[...] = (xc * inv * w + b).astype(o_ref.dtype)


def _ln_cfirst_kernel(x_ref, w_ref, b_ref, o_ref, *, eps):
    """channels_first: normalize over the channel (sublane) axis.

    x_ref: (1, C, T_S) with C on sublanes, spatial on lanes; w/b: (C, 1).
    """
    x = x_ref[0].astype(jnp.float32)                    # (C, T_S)
    mean = jnp.mean(x, axis=0, keepdims=True)
    xc = x - mean
    var = jnp.mean(xc * xc, axis=0, keepdims=True)
    inv = jax.lax.rsqrt(var + eps)
    w = w_ref[...].astype(jnp.float32)                  # (C, 1) -> broadcast over lanes
    b = b_ref[...].astype(jnp.float32)
    o_ref[0] = (xc * inv * w + b).astype(o_ref.dtype)


# ----------------------------------------------------------------------------
# Wrappers
# ----------------------------------------------------------------------------
def _ln_channels_last(x, weight, bias, eps):
    C = x.shape[-1]
    lead = x.shape[:-1]
    x2 = x.reshape(-1, C)                               # contiguous reshape: no HBM copy
    N = x2.shape[0]
    itemsize = jnp.dtype(x.dtype).itemsize

    # Lane-dense packing factor: smallest g with (g*C) % 128 == 0.
    g = 1
    if C % 128 != 0:
        cand = math.lcm(C, 128) // C
        # Only pack when the group matmuls stay tiny and rows divide evenly.
        if cand <= 8 and C <= 512 and N % cand == 0:
            g = cand

    if g > 1:
        W = g * C
        R = N // g
        xp = x2.reshape(R, W)                           # g consecutive rows per slab
        wp = jnp.tile(weight.astype(jnp.float32), g).reshape(1, W)
        bp = jnp.tile(bias.astype(jnp.float32), g).reshape(1, W)
        sel = jnp.kron(jnp.eye(g, dtype=jnp.float32), jnp.ones((C, 1), jnp.float32))   # (W, g)
        selt = jnp.kron(jnp.eye(g, dtype=jnp.float32), jnp.ones((1, C), jnp.float32))  # (g, W)
        tile = _pick_sublane_tile(R, W * 4)
        y = pl.pallas_call(
            functools.partial(_ln_packed_kernel, eps=eps, inv_c=1.0 / C),
            out_shape=jax.ShapeDtypeStruct((R, W), x.dtype),
            grid=(pl.cdiv(R, tile),),
            in_specs=[
                pl.BlockSpec((tile, W), lambda i: (i, 0)),
                pl.BlockSpec((1, W), lambda i: (0, 0)),
                pl.BlockSpec((1, W), lambda i: (0, 0)),
                pl.BlockSpec((W, g), lambda i: (0, 0)),
                pl.BlockSpec((g, W), lambda i: (0, 0)),
            ],
            out_specs=pl.BlockSpec((tile, W), lambda i: (i, 0)),
            compiler_params=pltpu.CompilerParams(
                dimension_semantics=("parallel",),
                vmem_limit_bytes=_VMEM_LIMIT_BYTES),
        )(xp, wp, bp, sel, selt)
        return y.reshape(*lead, C)

    # Plain path: reduce over the last (lane) axis.  C equals the full array
    # dim so the block shape is always legal regardless of C.
    tile = _pick_sublane_tile(N, C * 4)
    w2 = weight.astype(jnp.float32).reshape(1, C)
    b2 = bias.astype(jnp.float32).reshape(1, C)
    y = pl.pallas_call(
        functools.partial(_ln_last_kernel, eps=eps),
        out_shape=jax.ShapeDtypeStruct((N, C), x.dtype),
        grid=(pl.cdiv(N, tile),),
        in_specs=[
            pl.BlockSpec((tile, C), lambda i: (i, 0)),
            pl.BlockSpec((1, C), lambda i: (0, 0)),
            pl.BlockSpec((1, C), lambda i: (0, 0)),
        ],
        out_specs=pl.BlockSpec((tile, C), lambda i: (i, 0)),
        compiler_params=pltpu.CompilerParams(
            dimension_semantics=("parallel",),
            vmem_limit_bytes=_VMEM_LIMIT_BYTES),
    )(x2, w2, b2)
    return y.reshape(*lead, C)


def _ln_channels_first(x, weight, bias, eps):
    # x: (B, C, *spatial).  Spatial is flattened onto the lane axis, C sits on
    # sublanes; the kernel reduces over C directly — no wrapper transposes.
    B, C = x.shape[0], x.shape[1]
    S = 1
    for d in x.shape[2:]:
        S *= d
    x3 = x.reshape(B, C, S)                             # contiguous reshape: no HBM copy
    tile_s = _pick_lane_tile(S, C * 4)
    wcol = weight.astype(jnp.float32).reshape(C, 1)
    bcol = bias.astype(jnp.float32).reshape(C, 1)
    y = pl.pallas_call(
        functools.partial(_ln_cfirst_kernel, eps=eps),
        out_shape=jax.ShapeDtypeStruct((B, C, S), x.dtype),
        grid=(B, pl.cdiv(S, tile_s)),
        in_specs=[
            pl.BlockSpec((1, C, tile_s), lambda b, s: (b, 0, s)),
            pl.BlockSpec((C, 1), lambda b, s: (0, 0)),
            pl.BlockSpec((C, 1), lambda b, s: (0, 0)),
        ],
        out_specs=pl.BlockSpec((1, C, tile_s), lambda b, s: (b, 0, s)),
        compiler_params=pltpu.CompilerParams(
            dimension_semantics=("parallel", "parallel"),
            vmem_limit_bytes=_VMEM_LIMIT_BYTES),
    )(x3, wcol, bcol)
    return y.reshape(x.shape)


def layer_norm(x, weight, bias, eps=1e-6, data_format="channels_last"):
    if data_format == "channels_last":
        return _ln_channels_last(x, weight, bias, eps)
    elif data_format == "channels_first":
        return _ln_channels_first(x, weight, bias, eps)
    else:
        raise NotImplementedError


if __name__ == "__main__":
    key = jax.random.PRNGKey(0)
    k1, k2, k3, k4 = jax.random.split(key, 4)
    eps = 1e-6

    # ---- channels_last, small C (packed lane-dense path, g=4): (B, H, W, C) ----
    C1 = 32
    w1 = jnp.ones((C1,), jnp.float32) * 1.1
    b1 = jnp.full((C1,), 0.05, jnp.float32)
    x_cl = jax.random.normal(k1, (2, 8, 8, C1), jnp.float32)
    y_cl = layer_norm(x_cl, w1, b1, eps=eps, data_format="channels_last")

    # ---- channels_last, C=192 (packed path, g=2, lcm(192,128)=384) ----
    C2 = 192
    w2 = jax.random.normal(k3, (C2,), jnp.float32) * 0.1 + 1.0
    b2 = jax.random.normal(k4, (C2,), jnp.float32) * 0.1
    x_wide = jax.random.normal(k3, (4, 8, C2), jnp.float32)
    y_wide = layer_norm(x_wide, w2, b2, eps=eps, data_format="channels_last")

    # ---- channels_last, plain path (rows not divisible by g): (3, 5, 160) ----
    C3 = 160
    w3 = jnp.ones((C3,), jnp.float32)
    b3 = jnp.zeros((C3,), jnp.float32)
    x_plain = jax.random.normal(k2, (3, 5, C3), jnp.float32)
    y_plain = layer_norm(x_plain, w3, b3, eps=eps, data_format="channels_last")

    # ---- channels_first: (B, C, D, H, W), matching weight[:, None, None, None] ----
    x_cf = jax.random.normal(k2, (2, C1, 4, 8, 8), jnp.float32)
    y_cf = layer_norm(x_cf, w1, b1, eps=eps, data_format="channels_first")

    jax.block_until_ready((y_cl, y_wide, y_plain, y_cf))

    # Pure-JAX references mirroring the PyTorch forward exactly.
    def ref_last(x, w, b):
        m = x.mean(-1, keepdims=True)
        v = ((x - m) ** 2).mean(-1, keepdims=True)
        return (x - m) / jnp.sqrt(v + eps) * w + b

    def ref_first(x, w, b):
        m = x.mean(1, keepdims=True)
        v = ((x - m) ** 2).mean(1, keepdims=True)
        xn = (x - m) / jnp.sqrt(v + eps)
        return w[:, None, None, None] * xn + b[:, None, None, None]

    assert jnp.allclose(y_cl, ref_last(x_cl, w1, b1), atol=1e-5, rtol=1e-5)
    assert jnp.allclose(y_wide, ref_last(x_wide, w2, b2), atol=1e-5, rtol=1e-5)
    assert jnp.allclose(y_plain, ref_last(x_plain, w3, b3), atol=1e-5, rtol=1e-5)
    assert jnp.allclose(y_cf, ref_first(x_cf, w1, b1), atol=1e-5, rtol=1e-5)
    print("KERNEL_OK")
</pallas_src>

<mosaic_0001>
module attributes {stable_mosaic.version = 11 : i64} {
  func.func @_ln_packed_kernel(%arg0: i32, %arg1: memref<8x128xf32, #tpu.memory_space<vmem>>, %arg2: memref<1x128xf32, #tpu.memory_space<vmem>>, %arg3: memref<1x128xf32, #tpu.memory_space<vmem>>, %arg4: memref<128x4xf32, #tpu.memory_space<vmem>>, %arg5: memref<4x128xf32, #tpu.memory_space<vmem>>, %arg6: memref<8x128xf32, #tpu.memory_space<vmem>>) attributes {dimension_semantics = [#tpu.dimension_semantics<parallel>], iteration_bounds = array<i64: 4>, scalar_prefetch = 0 : i64, scratch_operands = 0 : i64, tpu.core_type = #tpu.core_type<tc>, window_params = [{transform_indices = @transform_0, window_bounds = array<i64: 8, 128>}, {pipeline_mode = #tpu.pipeline_mode<synchronous>, transform_indices = @transform_1, window_bounds = array<i64: 1, 128>}, {pipeline_mode = #tpu.pipeline_mode<synchronous>, transform_indices = @transform_2, window_bounds = array<i64: 1, 128>}, {pipeline_mode = #tpu.pipeline_mode<synchronous>, transform_indices = @transform_3, window_bounds = array<i64: 128, 4>}, {pipeline_mode = #tpu.pipeline_mode<synchronous>, transform_indices = @transform_4, window_bounds = array<i64: 4, 128>}, {transform_indices = @transform_5, window_bounds = array<i64: 8, 128>}]} {
    %c0 = arith.constant 0 : index
    %c0_0 = arith.constant 0 : index
    %0 = vector.load %arg1[%c0, %c0_0] : memref<8x128xf32, #tpu.memory_space<vmem>>, vector<8x128xf32>
    %c0_1 = arith.constant 0 : index
    %c0_2 = arith.constant 0 : index
    %1 = vector.load %arg4[%c0_1, %c0_2] : memref<128x4xf32, #tpu.memory_space<vmem>>, vector<128x4xf32>
    %c0_3 = arith.constant 0 : index
    %c0_4 = arith.constant 0 : index
    %2 = vector.load %arg5[%c0_3, %c0_4] : memref<4x128xf32, #tpu.memory_space<vmem>>, vector<4x128xf32>
    %cst = arith.constant dense<0.000000e+00> : vector<8x4xf32>
    %3 = tpu.matmul %0, %1, %cst {dimension_numbers = #tpu.dot_dimension_numbers<[1], [0], [0], [1], [0, 0, 1, 1], [], []>} : vector<8x128xf32>, vector<128x4xf32>, vector<8x4xf32> -> vector<8x4xf32>
    %cst_5 = arith.constant 3.125000e-02 : f32
    %4 = vector.broadcast %cst_5 : f32 to vector<8x4xf32>
    %5 = arith.mulf %3, %4 : vector<8x4xf32>
    %cst_6 = arith.constant dense<0.000000e+00> : vector<8x128xf32>
    %6 = tpu.matmul %5, %2, %cst_6 {dimension_numbers = #tpu.dot_dimension_numbers<[1], [0], [0], [1], [0, 0, 1, 1], [], []>} : vector<8x4xf32>, vector<4x128xf32>, vector<8x128xf32> -> vector<8x128xf32>
    %7 = arith.subf %0, %6 : vector<8x128xf32>
    %8 = arith.mulf %7, %7 : vector<8x128xf32>
    %cst_7 = arith.constant dense<0.000000e+00> : vector<8x4xf32>
    %9 = tpu.matmul %8, %1, %cst_7 {dimension_numbers = #tpu.dot_dimension_numbers<[1], [0], [0], [1], [0, 0, 1, 1], [], []>} : vector<8x128xf32>, vector<128x4xf32>, vector<8x4xf32> -> vector<8x4xf32>
    %cst_8 = arith.constant 3.125000e-02 : f32
    %10 = vector.broadcast %cst_8 : f32 to vector<8x4xf32>
    %11 = arith.mulf %9, %10 : vector<8x4xf32>
    %cst_9 = arith.constant 9.99999997E-7 : f32
    %12 = vector.broadcast %cst_9 : f32 to vector<8x4xf32>
    %13 = arith.addf %11, %12 : vector<8x4xf32>
    %14 = math.rsqrt %13 : vector<8x4xf32>
    %cst_10 = arith.constant dense<0.000000e+00> : vector<8x128xf32>
    %15 = tpu.matmul %14, %2, %cst_10 {dimension_numbers = #tpu.dot_dimension_numbers<[1], [0], [0], [1], [0, 0, 1, 1], [], []>} : vector<8x4xf32>, vector<4x128xf32>, vector<8x128xf32> -> vector<8x128xf32>
    %c0_11 = arith.constant 0 : index
    %c0_12 = arith.constant 0 : index
    %16 = vector.load %arg2[%c0_11, %c0_12] : memref<1x128xf32, #tpu.memory_space<vmem>>, vector<1x128xf32>
    %c0_13 = arith.constant 0 : index
    %c0_14 = arith.constant 0 : index
    %17 = vector.load %arg3[%c0_13, %c0_14] : memref<1x128xf32, #tpu.memory_space<vmem>>, vector<1x128xf32>
    %18 = arith.mulf %7, %15 : vector<8x128xf32>
    %19 = vector.broadcast %16 : vector<1x128xf32> to vector<8x128xf32>
    %20 = arith.mulf %18, %19 : vector<8x128xf32>
    %21 = vector.broadcast %17 : vector<1x128xf32> to vector<8x128xf32>
    %22 = arith.addf %20, %21 : vector<8x128xf32>
    %c0_15 = arith.constant 0 : index
    %c0_16 = arith.constant 0 : index
    %23 = vector.load %arg6[%c0_15, %c0_16] : memref<8x128xf32, #tpu.memory_space<vmem>>, vector<8x128xf32>
    tpu.vector_store %arg6[%c0_15, %c0_16], %22 {strides = array<i32>} : memref<8x128xf32, #tpu.memory_space<vmem>>, vector<8x128xf32>,
    return
  }
  func.func @transform_0(%arg0: i32) -> (i32, i32) {
    %c0_i32 = arith.constant 0 : i32
    %c0_i32_0 = arith.constant 0 : i32
    return %arg0, %c0_i32 : i32, i32
  }
  func.func @transform_1(%arg0: i32) -> (i32, i32) {
    %c0_i32 = arith.constant 0 : i32
    %c0_i32_0 = arith.constant 0 : i32
    %c0_i32_1 = arith.constant 0 : i32
    return %c0_i32, %c0_i32_0 : i32, i32
  }
  func.func @transform_2(%arg0: i32) -> (i32, i32) {
    %c0_i32 = arith.constant 0 : i32
    %c0_i32_0 = arith.constant 0 : i32
    %c0_i32_1 = arith.constant 0 : i32
    return %c0_i32, %c0_i32_0 : i32, i32
  }
  func.func @transform_3(%arg0: i32) -> (i32, i32) {
    %c0_i32 = arith.constant 0 : i32
    %c0_i32_0 = arith.constant 0 : i32
    %c0_i32_1 = arith.constant 0 : i32
    return %c0_i32, %c0_i32_0 : i32, i32
  }
  func.func @transform_4(%arg0: i32) -> (i32, i32) {
    %c0_i32 = arith.constant 0 : i32
    %c0_i32_0 = arith.constant 0 : i32
    %c0_i32_1 = arith.constant 0 : i32
    return %c0_i32, %c0_i32_0 : i32, i32
  }
  func.func @transform_5(%arg0: i32) -> (i32, i32) {
    %c0_i32 = arith.constant 0 : i32
    %c0_i32_0 = arith.constant 0 : i32
    return %arg0, %c0_i32 : i32, i32
  }
}

</mosaic_0001>

<llo_original>
// kernel: tpu_custom_call.1
$region0: #{tpu_custom_call.1}
  #allocation0 [shape = 'u32[]', space=smem, size = 0x4, offset = 0x4, fixed_abs, tag = 'smem constant byte address 0x4 - core index']
  #allocation1 [shape = 'u32[144,128]{1,0:T(1,128)}', space=vmem, size = 0x12000, scoped, tag = 'internal scratch']
  %s0 = inlined_call_operand.vmem [shape: f32[32,128], index: 0, kind: input, shape index: {}]
  %s1 = inlined_call_operand.vmem [shape: f32[1,128], index: 1, kind: input, shape index: {}]
  %s2 = inlined_call_operand.vmem [shape: f32[1,128], index: 2, kind: input, shape index: {}]
  %s3 = inlined_call_operand.vmem [shape: f32[128,4], index: 3, kind: input, shape index: {}]
  %s4 = inlined_call_operand.vmem [shape: f32[4,128], index: 4, kind: input, shape index: {}]
  %s5 = inlined_call_operand.hbm [shape: f32[32,128], index: 5, kind: output, shape index: {}]
  %s6 = sld [smem:[#allocation0]]
  $region53: #{tpu_custom_call.1} parent=0
    _
  %s8 = ssub.s32 1, %s6
  %s9 = scalar_select 0, %s8, %s6
  $region1: #{tpu_custom_call.1} parent=0
    #allocation2 [shape = 'u8[8192]{0}', space=vmem, size = 0x2000, scoped, tag = 'output window, operand 0']
    #allocation3 [shape = 's32[2]{0}', space=sflag, size = 0x8, scoped, tag = 'scoped memory for tpu_custom_call.1']
    %10 = vsyncpa [#allocation3], 0
    %s11 = scalar_lea.sflag [#allocation3], 1
    %12 = vsyncpa %s11, 0
    loop: start=0, step=1, limit=6
    $region2: #{tpu_custom_call.1} parent=1 // loop_pre_header
      _
    $region3: #{tpu_custom_call.1} parent=1 // loop_header
      %s14 = sphi 0, %s18
      %p15 = scmp.ge.s32.totalorder %s14, 6
      %s24 = sphi 0, %s26
      %s27 = sphi 0, %s24
      %s28 = sphi 0, %s27
      %s44 = sphi 0, %s28
      %s48 = sphi 0, %s48
      %s50 = sphi 0, %s48
      %s51 = sphi 0, %s50
      %s65 = sphi 0, %s51
      %s69 = sphi 0, %s69
      %s71 = sphi 0, %s69
      %s72 = sphi 0, %s71
      %s86 = sphi 0, %s72
      %s90 = sphi 0, %s90
      %s92 = sphi 0, %s90
      %s93 = sphi 0, %s92
      %s107 = sphi 0, %s93
      %s111 = sphi 0, %s111
      %s113 = sphi 0, %s111
      %s114 = sphi 0, %s113
      %s128 = sphi 0, %s114
      %s134 = sphi 0, %s136
      %s137 = sphi 0, %s134
      %s138 = sphi 0, %s137
      %s154 = sphi 0, %s138
    $region4: #{tpu_custom_call.1} parent=1 // loop_header_branch
      %17 = sbr.rel (%p15) target = $region8
    $region5: #{tpu_custom_call.1} parent=1 // loop_body
      %s19 = ssub.s32 %s14, 1
      %s20 = ssub.s32 %s14, 2
      %s21 = sadd.s32 %s14, 1
      %s22 = ssub.s32 %s14, %s21
      %p23 = scmp.eq.s32.totalorder %s22, 0
      %s25 = sadd.s32 %s24, 1
      %s26 = scalar_select %p23, %s24, %s25
      %p29 = pneg %p23
      %p30 = scmp.eq.s32.totalorder %s14, 3
      %p31 = por %p29, %p30
      %p32 = scmp.ne.s32.totalorder %s24, %s27
      %p33 = scmp.eq.s32.totalorder %s14, 0
      %p34 = por %p32, %p33
      %p35 = scmp.ne.s32.totalorder %s24, %s27
      %p36 = scmp.eq.s32.totalorder %s19, 3
      %p37 = por %p35, %p36
      %p38 = scmp.ne.s32.totalorder %s27, %s28
      %p39 = scmp.eq.s32.totalorder %s19, 0
      %p40 = por %p38, %p39
      %p41 = scmp.ne.s32.totalorder %s27, %s28
      %p42 = scmp.eq.s32.totalorder %s20, 3
      %p43 = por %p41, %p42
      %p45 = scmp.ne.s32.totalorder %s28, %s44
      %p46 = scmp.eq.s32.totalorder %s20, 0
      %p47 = por %p45, %p46
      %s49 = sadd.s32 %s48, 1
      %p52 = scmp.eq.s32.totalorder %s14, 3
      %p53 = scmp.ne.s32.totalorder %s48, %s50
      %p54 = scmp.eq.s32.totalorder %s14, 0
      %p55 = por %p53, %p54
      %p56 = scmp.ne.s32.totalorder %s48, %s50
      %p57 = scmp.eq.s32.totalorder %s19, 3
      %p58 = por %p56, %p57
      %p59 = scmp.ne.s32.totalorder %s50, %s51
      %p60 = scmp.eq.s32.totalorder %s19, 0
      %p61 = por %p59, %p60
      %p62 = scmp.ne.s32.totalorder %s50, %s51
      %p63 = scmp.eq.s32.totalorder %s20, 3
      %p64 = por %p62, %p63
      %p66 = scmp.ne.s32.totalorder %s51, %s65
      %p67 = scmp.eq.s32.totalorder %s20, 0
      %p68 = por %p66, %p67
      %s70 = sadd.s32 %s69, 1
      %p73 = scmp.eq.s32.totalorder %s14, 3
      %p74 = scmp.ne.s32.totalorder %s69, %s71
      %p75 = scmp.eq.s32.totalorder %s14, 0
      %p76 = por %p74, %p75
      %p77 = scmp.ne.s32.totalorder %s69, %s71
      %p78 = scmp.eq.s32.totalorder %s19, 3
      %p79 = por %p77, %p78
      %p80 = scmp.ne.s32.totalorder %s71, %s72
      %p81 = scmp.eq.s32.totalorder %s19, 0
      %p82 = por %p80, %p81
      %p83 = scmp.ne.s32.totalorder %s71, %s72
      %p84 = scmp.eq.s32.totalorder %s20, 3
      %p85 = por %p83, %p84
      %p87 = scmp.ne.s32.totalorder %s72, %s86
      %p88 = scmp.eq.s32.totalorder %s20, 0
      %p89 = por %p87, %p88
      %s91 = sadd.s32 %s90, 1
      %p94 = scmp.eq.s32.totalorder %s14, 3
      %p95 = scmp.ne.s32.totalorder %s90, %s92
      %p96 = scmp.eq.s32.totalorder %s14, 0
      %p97 = por %p95, %p96
      %p98 = scmp.ne.s32.totalorder %s90, %s92
      %p99 = scmp.eq.s32.totalorder %s19, 3
      %p100 = por %p98, %p99
      %p101 = scmp.ne.s32.totalorder %s92, %s93
      %p102 = scmp.eq.s32.totalorder %s19, 0
      %p103 = por %p101, %p102
      %p104 = scmp.ne.s32.totalorder %s92, %s93
      %p105 = scmp.eq.s32.totalorder %s20, 3
      %p106 = por %p104, %p105
      %p108 = scmp.ne.s32.totalorder %s93, %s107
      %p109 = scmp.eq.s32.totalorder %s20, 0
      %p110 = por %p108, %p109
      %s112 = sadd.s32 %s111, 1
      %p115 = scmp.eq.s32.totalorder %s14, 3
      %p116 = scmp.ne.s32.totalorder %s111, %s113
      %p117 = scmp.eq.s32.totalorder %s14, 0
      %p118 = por %p116, %p117
      %p119 = scmp.ne.s32.totalorder %s111, %s113
      %p120 = scmp.eq.s32.totalorder %s19, 3
      %p121 = por %p119, %p120
      %p122 = scmp.ne.s32.totalorder %s113, %s114
      %p123 = scmp.eq.s32.totalorder %s19, 0
      %p124 = por %p122, %p123
      %p125 = scmp.ne.s32.totalorder %s113, %s114
      %p126 = scmp.eq.s32.totalorder %s20, 3
      %p127 = por %p125, %p126
      %p129 = scmp.ne.s32.totalorder %s114, %s128
      %p130 = scmp.eq.s32.totalorder %s20, 0
      %p131 = por %p129, %p130
      %s132 = ssub.s32 %s14, %s21
      %p133 = scmp.eq.s32.totalorder %s132, 0
      %s135 = sadd.s32 %s134, 1
      %s136 = scalar_select %p133, %s134, %s135
      %p139 = pneg %p133
      %p140 = scmp.eq.s32.totalorder %s14, 3
      %p141 = por %p139, %p140
      %p142 = scmp.ne.s32.totalorder %s134, %s137
      %p143 = scmp.eq.s32.totalorder %s14, 0
      %p144 = por %p142, %p143
      %p145 = scmp.ne.s32.totalorder %s134, %s137
      %p146 = scmp.eq.s32.totalorder %s19, 3
      %p147 = por %p145, %p146
      %p148 = scmp.ne.s32.totalorder %s137, %s138
      %p149 = scmp.eq.s32.totalorder %s19, 0
      %p150 = por %p148, %p149
      %p151 = scmp.ne.s32.totalorder %s137, %s138
      %p152 = scmp.eq.s32.totalorder %s20, 3
      %p153 = por %p151, %p152
      %p155 = scmp.ne.s32.totalorder %s138, %s154
      %p156 = scmp.eq.s32.totalorder %s20, 0
      %p157 = por %p155, %p156
      %p158 = scmp.le.s32.totalorder 1, %s14
      %p159 = scmp.lt.s32.totalorder %s14, 5
      %p160 = pnand %p158, %p159
      %p161 = pneg %p160
      // Predicated region
      $region9: #{tpu_custom_call.1} parent=5 // pred_check
        _
      $region10: #{tpu_custom_call.1} parent=5 // pred_check_branch
        %163 = sbr.rel (%p160) target = $region12
      $region11: #{tpu_custom_call.1} parent=5 // pred_region
        %s164 = ssub.s32 %s14, 1
        // Predicated region
        $region13: #{tpu_custom_call.1} parent=11 // pred_check
          %p165 = pneg %p61
        $region14: #{tpu_custom_call.1} parent=11 // pred_check_branch
          %167 = sbr.rel (%p165) target = $region16
        $region15: #{tpu_custom_call.1} parent=11 // pred_region
          _
        $region16: #{tpu_custom_call.1} parent=11 // pred_fallthru
          _
        // Predicated region
        $region17: #{tpu_custom_call.1} parent=11 // pred_check
          %p168 = pneg %p82
        $region18: #{tpu_custom_call.1} parent=11 // pred_check_branch
          %170 = sbr.rel (%p168) target = $region20
        $region19: #{tpu_custom_call.1} parent=11 // pred_region
          _
        $region20: #{tpu_custom_call.1} parent=11 // pred_fallthru
          _
        // Predicated region
        $region21: #{tpu_custom_call.1} parent=11 // pred_check
          %p171 = pneg %p103
        $region22: #{tpu_custom_call.1} parent=11 // pred_check_branch
          %173 = sbr.rel (%p171) target = $region24
        $region23: #{tpu_custom_call.1} parent=11 // pred_region
          _
        $region24: #{tpu_custom_call.1} parent=11 // pred_fallthru
          _
        // Predicated region
        $region25: #{tpu_custom_call.1} parent=11 // pred_check
          %p174 = pneg %p124
        $region26: #{tpu_custom_call.1} parent=11 // pred_check_branch
          %176 = sbr.rel (%p174) target = $region28
        $region27: #{tpu_custom_call.1} parent=11 // pred_region
          _
        $region28: #{tpu_custom_call.1} parent=11 // pred_fallthru
          _
      $region12: #{tpu_custom_call.1} parent=5 // pred_fallthru
        _
      %p177 = scmp.lt.s32.totalorder %s14, 4
      // Predicated region
      $region29: #{tpu_custom_call.1} parent=5 // pred_check
        %p178 = pneg %p177
      $region30: #{tpu_custom_call.1} parent=5 // pred_check_branch
        %180 = sbr.rel (%p178) target = $region32
      $region31: #{tpu_custom_call.1} parent=5 // pred_region
        // Predicated region
        $region33: #{tpu_custom_call.1} parent=31 // pred_check
          %p181 = pneg %p34
        $region34: #{tpu_custom_call.1} parent=31 // pred_check_branch
          %183 = sbr.rel (%p181) target = $region36
        $region35: #{tpu_custom_call.1} parent=31 // pred_region
          %p184 = scmp.lt.s32.totalorder %s14, 3
          %s185 = scalar_select %p184, %s14, 3
          %s186 = smul.addr %s185, 8
          %s187 = scalar_lea.vmem %s0, %s186
        $region36: #{tpu_custom_call.1} parent=31 // pred_fallthru
          _
      $region32: #{tpu_custom_call.1} parent=5 // pred_fallthru
        _
      %p188 = scmp.le.s32.totalorder 1, %s14
      %p189 = scmp.lt.s32.totalorder %s14, 5
      %p190 = pnand %p188, %p189
      %p191 = pneg %p190
      // Predicated region
      $region37: #{tpu_custom_call.1} parent=5 // pred_check
        _
      $region38: #{tpu_custom_call.1} parent=5 // pred_check_branch
        %193 = sbr.rel (%p190) target = $region40
      $region39: #{tpu_custom_call.1} parent=5 // pred_region
        %s194 = ssub.s32 %s14, 1
        %p195 = scmp.lt.s32.totalorder %s19, 3
        %s196 = scalar_select %p195, %s19, 3
        %s197 = smul.addr %s196, 8
        %s198 = scalar_lea.vmem %s0, %s197
        %p199 = pneg %p40
        %p200 = pneg %p37
        %p201 = pneg %p61
        %p202 = pneg %p58
        %p203 = pneg %p82
        %p204 = pneg %p79
        %p205 = pneg %p103
        %p206 = pneg %p100
        %p207 = pneg %p124
        %p208 = pneg %p121
        %p209 = pneg %p150
        %p210 = pneg %p147
        %s211 = sand.u32 %s137, 1
        %s212 = scalar_lea.sflag [#allocation3], %s211
        %s213 = sand.u32 %s137, 1
        %s214 = smul.addr %s213, 8
        %s215 = scalar_lea.vmem [#allocation2], %s214
        %p216 = scmp.lt.s32.totalorder %s19, 3
        %s217 = scalar_select %p216, %s19, 3
        %s218 = smul.addr %s217, 8
        %s219 = scalar_lea.vmem %s0, %s218
        %v220 = vld [vmem:[%s219] sm:$0xff]
        %v221 = vld [vmem:[%s3] sm:$0xff]
        %v222 = vld [vmem:[%s3 + $0x8] sm:$0xff]
        %v223 = vld [vmem:[%s3 + $0x10] sm:$0xff]
        %v224 = vld [vmem:[%s3 + $0x18] sm:$0xff]
        %v225 = vld [vmem:[%s3 + $0x20] sm:$0xff]
        %v226 = vld [vmem:[%s3 + $0x28] sm:$0xff]
        %v227 = vld [vmem:[%s3 + $0x30] sm:$0xff]
        %v228 = vld [vmem:[%s3 + $0x38] sm:$0xff]
        %v229 = vld [vmem:[%s3 + $0x40] sm:$0xff]
        %v230 = vld [vmem:[%s3 + $0x48] sm:$0xff]
        %v231 = vld [vmem:[%s3 + $0x50] sm:$0xff]
        %v232 = vld [vmem:[%s3 + $0x58] sm:$0xff]
        %v233 = vld [vmem:[%s3 + $0x60] sm:$0xff]
        %v234 = vld [vmem:[%s3 + $0x68] sm:$0xff]
        %v235 = vld [vmem:[%s3 + $0x70] sm:$0xff]
        %v236 = vld [vmem:[%s3 + $0x78] sm:$0xff]
        %v237 = vld [vmem:[%s4] sm:$0xf]
        %238 = vmatprep.subr.mxu0 0.0
        %239 = vmatpush1.msra.mxu0 %v221
        %240 = vmatprep.subr.mxu0 0.0
        %241 = vmatpush1.msra.mxu0 %v222
        %242 = vmatprep.subr.mxu0 0.0
        %243 = vmatpush1.msra.mxu0 %v223
        %244 = vmatprep.subr.mxu0 0.0
        %245 = vmatpush1.msra.mxu0 %v224
        %246 = vmatprep.subr.mxu0 0.0
        %247 = vmatpush1.msra.mxu0 %v225
        %248 = vmatprep.subr.mxu0 0.0
        %249 = vmatpush1.msra.mxu0 %v226
        %250 = vmatprep.subr.mxu0 0.0
        %251 = vmatpush1.msra.mxu0 %v227
        %252 = vmatprep.subr.mxu0 0.0
        %253 = vmatpush1.msra.mxu0 %v228
        %254 = vmatprep.subr.mxu0 0.0
        %255 = vmatpush1.msra.mxu0 %v229
        %256 = vmatprep.subr.mxu0 0.0
        %257 = vmatpush1.msra.mxu0 %v230
        %258 = vmatprep.subr.mxu0 0.0
        %259 = vmatpush1.msra.mxu0 %v231
        %260 = vmatprep.subr.mxu0 0.0
        %261 = vmatpush1.msra.mxu0 %v232
        %262 = vmatprep.subr.mxu0 0.0
        %263 = vmatpush1.msra.mxu0 %v233
        %264 = vmatprep.subr.mxu0 0.0
        %265 = vmatpush1.msra.mxu0 %v234
        %266 = vmatprep.subr.mxu0 0.0
        %267 = vmatpush1.msra.mxu0 %v235
        %268 = vmatprep.subr.mxu0 0.0
        %269 = vmatpush1.msra.mxu0 %v236
        %270 = vmatprep.subr.mxu0 0.0
        %271 = vmatpush1.msra.mxu0 0.0
        %272 = vmatprep.subr.mxu0 0.0
        %273 = vmatpush1.msra.mxu0 0.0
        %274 = vmatprep.subr.mxu0 0.0
        %275 = vmatpush1.msra.mxu0 0.0
        %276 = vmatprep.subr.mxu0 0.0
        %277 = vmatpush1.msra.mxu0 0.0
        %278 = vmatprep.subr.mxu0 0.0
        %279 = vmatpush1.msra.mxu0 0.0
        %280 = vmatprep.subr.mxu0 0.0
        %281 = vmatpush1.msra.mxu0 0.0
        %282 = vmatprep.subr.mxu0 0.0
        %283 = vmatpush1.msra.mxu0 0.0
        %284 = vmatprep.subr.mxu0 0.0
        %285 = vmatpush1.msra.mxu0 0.0
        %286 = vmatprep.subr.mxu0 0.0
        %287 = vmatpush1.msra.mxu0 0.0
        %288 = vmatprep.subr.mxu0 0.0
        %289 = vmatpush1.msra.mxu0 0.0
        %290 = vmatprep.subr.mxu0 0.0
        %291 = vmatpush1.msra.mxu0 0.0
        %292 = vmatprep.subr.mxu0 0.0
        %293 = vmatpush1.msra.mxu0 0.0
        %294 = vmatprep.subr.mxu0 0.0
        %295 = vmatpush1.msra.mxu0 0.0
        %296 = vmatprep.subr.mxu0 0.0
        %297 = vmatpush1.msra.mxu0 0.0
        %298 = vmatprep.subr.mxu0 0.0
        %299 = vmatpush1.msra.mxu0 0.0
        %300 = vmatprep.subr.mxu0 0.0
        %301 = vmatpush1.msra.mxu0 0.0
        %302 = vmatprep.mubr.f32.mxu0 0.0
        %303 = vmatmul.mubr.f32.gmra.mrb[0].mxu0 %v220
        %v304 = vpop.f32.mrb[0].mxu0
        %v305 = vadd.f32 0.0, %v304
        %v306 = vpop.f32.mrb[0].mxu0
        %307 = vdwg.mxu0
        %v308 = vmul.f32 %v305, 0.03125
        %vm309 = vcmask 31744
        %v311 = vsel %vm309, %v308, 0
        %vm313 = vcmask 1043456
        %v315 = vsel %vm313, %v237, 0
        %317 = vmatprep.subr.mxu0 0.0
        %318 = vmatpush1.msra.mxu0 %v315
        %319 = vmatprep.subr.mxu0 0.0
        %320 = vmatpush1.msra.mxu0 0.0
        %321 = vmatprep.subr.mxu0 0.0
        %322 = vmatpush1.msra.mxu0 0.0
        %323 = vmatprep.subr.mxu0 0.0
        %324 = vmatpush1.msra.mxu0 0.0
        %325 = vmatprep.subr.mxu0 0.0
        %326 = vmatpush1.msra.mxu0 0.0
        %327 = vmatprep.subr.mxu0 0.0
        %328 = vmatpush1.msra.mxu0 0.0
        %329 = vmatprep.subr.mxu0 0.0
        %330 = vmatpush1.msra.mxu0 0.0
        %331 = vmatprep.subr.mxu0 0.0
        %332 = vmatpush1.msra.mxu0 0.0
        %333 = vmatprep.subr.mxu0 0.0
        %334 = vmatpush1.msra.mxu0 0.0
        %335 = vmatprep.subr.mxu0 0.0
        %336 = vmatpush1.msra.mxu0 0.0
        %337 = vmatprep.subr.mxu0 0.0
        %338 = vmatpush1.msra.mxu0 0.0
        %339 = vmatprep.subr.mxu0 0.0
        %340 = vmatpush1.msra.mxu0 0.0
        %341 = vmatprep.subr.mxu0 0.0
        %342 = vmatpush1.msra.mxu0 0.0
        %343 = vmatprep.subr.mxu0 0.0
        %344 = vmatpush1.msra.mxu0 0.0
        %345 = vmatprep.subr.mxu0 0.0
        %346 = vmatpush1.msra.mxu0 0.0
        %347 = vmatprep.subr.mxu0 0.0
        %348 = vmatpush1.msra.mxu0 0.0
        %349 = vmatprep.subr.mxu0 0.0
        %350 = vmatpush1.msra.mxu0 0.0
        %351 = vmatprep.subr.mxu0 0.0
        %352 = vmatpush1.msra.mxu0 0.0
        %353 = vmatprep.subr.mxu0 0.0
        %354 = vmatpush1.msra.mxu0 0.0
        %355 = vmatprep.subr.mxu0 0.0
        %356 = vmatpush1.msra.mxu0 0.0
        %357 = vmatprep.subr.mxu0 0.0
        %358 = vmatpush1.msra.mxu0 0.0
        %359 = vmatprep.subr.mxu0 0.0
        %360 = vmatpush1.msra.mxu0 0.0
        %361 = vmatprep.subr.mxu0 0.0
        %362 = vmatpush1.msra.mxu0 0.0
        %363 = vmatprep.subr.mxu0 0.0
        %364 = vmatpush1.msra.mxu0 0.0
        %365 = vmatprep.subr.mxu0 0.0
        %366 = vmatpush1.msra.mxu0 0.0
        %367 = vmatprep.subr.mxu0 0.0
        %368 = vmatpush1.msra.mxu0 0.0
        %369 = vmatprep.subr.mxu0 0.0
        %370 = vmatpush1.msra.mxu0 0.0
        %371 = vmatprep.subr.mxu0 0.0
        %372 = vmatpush1.msra.mxu0 0.0
        %373 = vmatprep.subr.mxu0 0.0
        %374 = vmatpush1.msra.mxu0 0.0
        %375 = vmatprep.subr.mxu0 0.0
        %376 = vmatpush1.msra.mxu0 0.0
        %377 = vmatprep.subr.mxu0 0.0
        %378 = vmatpush1.msra.mxu0 0.0
        %379 = vmatprep.subr.mxu0 0.0
        %380 = vmatpush1.msra.mxu0 0.0
        %381 = vmatprep.mubr.f32.mxu0 0.0
        %382 = vmatmul.mubr.f32.gmra.mrb[0].mxu0 %v311
        %v383 = vpop.f32.mrb[0].mxu0
        %v384 = vadd.f32 0.0, %v383
        %v385 = vpop.f32.mrb[0].mxu0
        %386 = vdwg.mxu0
        %v387 = vsub.f32 %v220, %v384
        %v388 = vmul.f32 %v387, %v387
        %389 = vmatprep.subr.mxu0 0.0
        %390 = vmatpush1.msra.mxu0 %v221
        %391 = vmatprep.subr.mxu0 0.0
        %392 = vmatpush1.msra.mxu0 %v222
        %393 = vmatprep.subr.mxu0 0.0
        %394 = vmatpush1.msra.mxu0 %v223
        %395 = vmatprep.subr.mxu0 0.0
        %396 = vmatpush1.msra.mxu0 %v224
        %397 = vmatprep.subr.mxu0 0.0
        %398 = vmatpush1.msra.mxu0 %v225
        %399 = vmatprep.subr.mxu0 0.0
        %400 = vmatpush1.msra.mxu0 %v226
        %401 = vmatprep.subr.mxu0 0.0
        %402 = vmatpush1.msra.mxu0 %v227
        %403 = vmatprep.subr.mxu0 0.0
        %404 = vmatpush1.msra.mxu0 %v228
        %405 = vmatprep.subr.mxu0 0.0
        %406 = vmatpush1.msra.mxu0 %v229
        %407 = vmatprep.subr.mxu0 0.0
        %408 = vmatpush1.msra.mxu0 %v230
        %409 = vmatprep.subr.mxu0 0.0
        %410 = vmatpush1.msra.mxu0 %v231
        %411 = vmatprep.subr.mxu0 0.0
        %412 = vmatpush1.msra.mxu0 %v232
        %413 = vmatprep.subr.mxu0 0.0
        %414 = vmatpush1.msra.mxu0 %v233
        %415 = vmatprep.subr.mxu0 0.0
        %416 = vmatpush1.msra.mxu0 %v234
        %417 = vmatprep.subr.mxu0 0.0
        %418 = vmatpush1.msra.mxu0 %v235
        %419 = vmatprep.subr.mxu0 0.0
        %420 = vmatpush1.msra.mxu0 %v236
        %421 = vmatprep.subr.mxu0 0.0
        %422 = vmatpush1.msra.mxu0 0.0
        %423 = vmatprep.subr.mxu0 0.0
        %424 = vmatpush1.msra.mxu0 0.0
        %425 = vmatprep.subr.mxu0 0.0
        %426 = vmatpush1.msra.mxu0 0.0
        %427 = vmatprep.subr.mxu0 0.0
        %428 = vmatpush1.msra.mxu0 0.0
        %429 = vmatprep.subr.mxu0 0.0
        %430 = vmatpush1.msra.mxu0 0.0
        %431 = vmatprep.subr.mxu0 0.0
        %432 = vmatpush1.msra.mxu0 0.0
        %433 = vmatprep.subr.mxu0 0.0
        %434 = vmatpush1.msra.mxu0 0.0
        %435 = vmatprep.subr.mxu0 0.0
        %436 = vmatpush1.msra.mxu0 0.0
        %437 = vmatprep.subr.mxu0 0.0
        %438 = vmatpush1.msra.mxu0 0.0
        %439 = vmatprep.subr.mxu0 0.0
        %440 = vmatpush1.msra.mxu0 0.0
        %441 = vmatprep.subr.mxu0 0.0
        %442 = vmatpush1.msra.mxu0 0.0
        %443 = vmatprep.subr.mxu0 0.0
        %444 = vmatpush1.msra.mxu0 0.0
        %445 = vmatprep.subr.mxu0 0.0
        %446 = vmatpush1.msra.mxu0 0.0
        %447 = vmatprep.subr.mxu0 0.0
        %448 = vmatpush1.msra.mxu0 0.0
        %449 = vmatprep.subr.mxu0 0.0
        %450 = vmatpush1.msra.mxu0 0.0
        %451 = vmatprep.subr.mxu0 0.0
        %452 = vmatpush1.msra.mxu0 0.0
        %453 = vmatprep.mubr.f32.mxu0 0.0
        %454 = vmatmul.mubr.f32.gmra.mrb[0].mxu0 %v388
        %v455 = vpop.f32.mrb[0].mxu0
        %v456 = vadd.f32 0.0, %v455
        %v457 = vpop.f32.mrb[0].mxu0
        %458 = vdwg.mxu0
        %v459 = vmul.f32 %v456, 0.03125
        %v460 = vadd.f32 %v459, 1e-06
        %v461 = vrsqrt.pop %v460
        %v463 = vsel %vm309, %v461, 0
        %465 = vmatprep.subr.mxu0 0.0
        %466 = vmatpush1.msra.mxu0 %v315
        %467 = vmatprep.subr.mxu0 0.0
        %468 = vmatpush1.msra.mxu0 0.0
        %469 = vmatprep.subr.mxu0 0.0
        %470 = vmatpush1.msra.mxu0 0.0
        %471 = vmatprep.subr.mxu0 0.0
        %472 = vmatpush1.msra.mxu0 0.0
        %473 = vmatprep.subr.mxu0 0.0
        %474 = vmatpush1.msra.mxu0 0.0
        %475 = vmatprep.subr.mxu0 0.0
        %476 = vmatpush1.msra.mxu0 0.0
        %477 = vmatprep.subr.mxu0 0.0
        %478 = vmatpush1.msra.mxu0 0.0
        %479 = vmatprep.subr.mxu0 0.0
        %480 = vmatpush1.msra.mxu0 0.0
        %481 = vmatprep.subr.mxu0 0.0
        %482 = vmatpush1.msra.mxu0 0.0
        %483 = vmatprep.subr.mxu0 0.0
        %484 = vmatpush1.msra.mxu0 0.0
        %485 = vmatprep.subr.mxu0 0.0
        %486 = vmatpush1.msra.mxu0 0.0
        %487 = vmatprep.subr.mxu0 0.0
        %488 = vmatpush1.msra.mxu0 0.0
        %489 = vmatprep.subr.mxu0 0.0
        %490 = vmatpush1.msra.mxu0 0.0
        %491 = vmatprep.subr.mxu0 0.0
        %492 = vmatpush1.msra.mxu0 0.0
        %493 = vmatprep.subr.mxu0 0.0
        %494 = vmatpush1.msra.mxu0 0.0
        %495 = vmatprep.subr.mxu0 0.0
        %496 = vmatpush1.msra.mxu0 0.0
        %497 = vmatprep.subr.mxu0 0.0
        %498 = vmatpush1.msra.mxu0 0.0
        %499 = vmatprep.subr.mxu0 0.0
        %500 = vmatpush1.msra.mxu0 0.0
        %501 = vmatprep.subr.mxu0 0.0
        %502 = vmatpush1.msra.mxu0 0.0
        %503 = vmatprep.subr.mxu0 0.0
        %504 = vmatpush1.msra.mxu0 0.0
        %505 = vmatprep.subr.mxu0 0.0
        %506 = vmatpush1.msra.mxu0 0.0
        %507 = vmatprep.subr.mxu0 0.0
        %508 = vmatpush1.msra.mxu0 0.0
        %509 = vmatprep.subr.mxu0 0.0
        %510 = vmatpush1.msra.mxu0 0.0
        %511 = vmatprep.subr.mxu0 0.0
        %512 = vmatpush1.msra.mxu0 0.0
        %513 = vmatprep.subr.mxu0 0.0
        %514 = vmatpush1.msra.mxu0 0.0
        %515 = vmatprep.subr.mxu0 0.0
        %516 = vmatpush1.msra.mxu0 0.0
        %517 = vmatprep.subr.mxu0 0.0
        %518 = vmatpush1.msra.mxu0 0.0
        %519 = vmatprep.subr.mxu0 0.0
        %520 = vmatpush1.msra.mxu0 0.0
        %521 = vmatprep.subr.mxu0 0.0
        %522 = vmatpush1.msra.mxu0 0.0
        %523 = vmatprep.subr.mxu0 0.0
        %524 = vmatpush1.msra.mxu0 0.0
        %525 = vmatprep.subr.mxu0 0.0
        %526 = vmatpush1.msra.mxu0 0.0
        %527 = vmatprep.subr.mxu0 0.0
        %528 = vmatpush1.msra.mxu0 0.0
        %529 = vmatprep.mubr.f32.mxu0 0.0
        %530 = vmatmul.mubr.f32.gmra.mrb[0].mxu0 %v463
        %v531 = vpop.f32.mrb[0].mxu0
        %v532 = vadd.f32 0.0, %v531
        %v533 = vpop.f32.mrb[0].mxu0
        %534 = vdwg.mxu0
        %v535 = vld [vmem:[%s1] sm:$0x1]
        %v536 = vld [vmem:[%s2] sm:$0x1]
        %v537 = vmul.f32 %v387, %v532
        %v539 = vlaneseq
        %v540 = vshrl.u32 %v539, 7
        %v541 = vsub.s32 0, %v540
        %v542 = vrot.slane %v535, %v541
        %v544 = vmul.f32 %v537, %v542
        %v546 = vlaneseq
        %v547 = vshrl.u32 %v546, 7
        %v548 = vsub.s32 0, %v547
        %v549 = vrot.slane %v536, %v548
        %v551 = vadd.f32 %v544, %v549
        %552 = vst [vmem:[%s215] sm:$0xff] %v551
        %s553 = sand.u32 %s137, 1
        %s554 = scalar_lea.sflag [#allocation3], %s553
        %s555 = sand.u32 %s137, 1
        %s556 = smul.addr %s555, 8
        %s557 = scalar_lea.vmem [#allocation2], %s556
        // Predicated region
        $region41: #{tpu_custom_call.1} parent=39 // pred_check
          %p558 = pneg %p147
        $region42: #{tpu_custom_call.1} parent=39 // pred_check_branch
          %560 = sbr.rel (%p558) target = $region44
        $region43: #{tpu_custom_call.1} parent=39 // pred_region
          %s562 = ssub.s32 128, 128
          %563 = vsyncadd %s554, %s562
          %s564 = smul.addr %s19, 128
          %s565 = scalar_lea.hbm %s5, %s564
          %s567 = sshll.u32 %s557, 4
          %s568 = int_to_ptr.vmem [resolvable:$true] %s567
          %570 = dma.vmem_to_hbm [thread:$0]  %s568, 128, %s565, %s554
        $region44: #{tpu_custom_call.1} parent=39 // pred_fallthru
          _
      $region40: #{tpu_custom_call.1} parent=5 // pred_fallthru
        _
      %p571 = scmp.le.s32.totalorder 2, %s14
      // Predicated region
      $region45: #{tpu_custom_call.1} parent=5 // pred_check
        %p572 = pneg %p571
      $region46: #{tpu_custom_call.1} parent=5 // pred_check_branch
        %574 = sbr.rel (%p572) target = $region48
      $region47: #{tpu_custom_call.1} parent=5 // pred_region
        %s575 = ssub.s32 %s14, 2
        // Predicated region
        $region49: #{tpu_custom_call.1} parent=47 // pred_check
          %p576 = pneg %p153
        $region50: #{tpu_custom_call.1} parent=47 // pred_check_branch
          %578 = sbr.rel (%p576) target = $region52
        $region51: #{tpu_custom_call.1} parent=47 // pred_region
          %s579 = sand.u32 %s138, 1
          %s580 = scalar_lea.sflag [#allocation3], %s579
          %s581 = sand.u32 %s138, 1
          %s582 = smul.addr %s581, 8
          %s583 = scalar_lea.vmem [#allocation2], %s582
          %584 = dma.done %s580, 128
        $region52: #{tpu_custom_call.1} parent=47 // pred_fallthru
          _
      $region48: #{tpu_custom_call.1} parent=5 // pred_fallthru
        _
    $region6: #{tpu_custom_call.1} parent=1 // loop_footer
      %s18 = sadd.s32 1, %s14
    $region7: #{tpu_custom_call.1} parent=1 // loop_footer_branch
      %13 = sbr.rel target = $region3
    $region8: #{tpu_custom_call.1} parent=1 // loop_exit
      _
    %585 = vsyncpa [#allocation3], 1
    %s586 = scalar_lea.sflag [#allocation3], 1
    %587 = vsyncpa %s586, 1

</llo_original>
